<compile_context>
chip_gen: v6e
topology: v6e:2x2x1
jax: 0.10.0
libtpu: 0.0.40
codegen_flags: <defaults>
</compile_context>

<pallas_src>
import math
import functools

import jax
import jax.numpy as jnp
from jax import lax
from jax.experimental import pallas as pl
from jax.experimental.pallas import tpu as pltpu


# ----------------------------------------------------------------------------
# Parameter / buffer construction (mirrors PyTorch __init__)
# ----------------------------------------------------------------------------
def make_positional_encoding_table(d_model: int, max_len: int,
                                   dtype=jnp.float32) -> jnp.ndarray:
    position = jnp.arange(max_len, dtype=jnp.float32)[:, None]            # (L, 1)
    div_term = jnp.exp(
        jnp.arange(0, d_model, 2, dtype=jnp.float32)
        * (-math.log(10000.0) / d_model)
    )                                                                      # (D/2,)
    pe = jnp.zeros((max_len, 1, d_model), dtype=jnp.float32)
    pe = pe.at[:, 0, 0::2].set(jnp.sin(position * div_term))
    pe = pe.at[:, 0, 1::2].set(jnp.cos(position * div_term))
    return pe.astype(dtype)                                                # (L, 1, D)


# ----------------------------------------------------------------------------
# Counter-based hash (murmur3 fmix32) in int32 two's-complement arithmetic.
# Works on TPU (VPU integer ops) and in interpret mode.
# ----------------------------------------------------------------------------
_FMIX_C1 = -2048144789   # 0x85ebca6b as signed int32
_FMIX_C2 = -1028477387   # 0xc2b2ae35 as signed int32
_GOLDEN = -1640531527    # 0x9e3779b9 as signed int32


def _fmix32(h):
    h = h ^ lax.shift_right_logical(h, jnp.int32(16))
    h = h * jnp.int32(_FMIX_C1)
    h = h ^ lax.shift_right_logical(h, jnp.int32(13))
    h = h * jnp.int32(_FMIX_C2)
    h = h ^ lax.shift_right_logical(h, jnp.int32(16))
    return h


# ----------------------------------------------------------------------------
# Pallas kernels
# ----------------------------------------------------------------------------
def _pe_add_dropout_kernel(seed_ref, x_ref, pe_ref, o_ref, *,
                           keep_thresh: int, inv_keep: float):
    """x:(TS,B,D), pe:(TS,1,D) -> out:(TS,B,D) with inverted dropout."""
    TS, B, D = x_ref.shape
    y = x_ref[...] + pe_ref[...]                       # broadcast over batch (VPU)

    # Unique global element id -> hash -> uniform 32-bit pattern.
    shp = (TS, B, D)
    s_ix = lax.broadcasted_iota(jnp.int32, shp, 0) + pl.program_id(0) * TS
    b_ix = lax.broadcasted_iota(jnp.int32, shp, 1)
    d_ix = lax.broadcasted_iota(jnp.int32, shp, 2)
    idx = (s_ix * B + b_ix) * D + d_ix
    bits = _fmix32(idx ^ (seed_ref[0] * jnp.int32(_GOLDEN)))

    # Integer-threshold dropout (exact, no float convert), scale fused in.
    keep = bits >= jnp.int32(keep_thresh)
    o_ref[...] = (jnp.where(keep, y, 0.0) * inv_keep).astype(o_ref.dtype)


def _pe_add_kernel(x_ref, pe_ref, o_ref):
    """Eval-mode path: x + pe (dropout is identity)."""
    # TODO(synk): in a full model, eval-mode x + pe is best left to XLA fusion
    # with surrounding ops; kept in Pallas here (same tiled grid) per task spec.
    o_ref[...] = (x_ref[...] + pe_ref[...]).astype(o_ref.dtype)


# ----------------------------------------------------------------------------
# Python wrapper
# ----------------------------------------------------------------------------
def _pick_seq_tile(S: int, B: int, D: int, itemsize: int,
                   target_bytes: int = 2 << 20) -> int:
    """Largest divisor of S whose (TS,B,D) tile is ~<= target_bytes."""
    rows = max(1, target_bytes // max(1, B * D * itemsize))
    ts = int(min(S, rows))
    while S % ts:
        ts -= 1
    return ts


def positional_encoding_forward(
    x: jnp.ndarray,
    pe: jnp.ndarray,
    *,
    dropout_p: float = 0.1,
    training: bool = True,
    seed: int = 0,
) -> jnp.ndarray:
    """x: [seq_len, batch, d_model]; pe: [max_len, 1, d_model]."""
    S, B, D = x.shape
    pe_slice = pe[:S].astype(x.dtype)                  # (S, 1, D)
    out_shape = jax.ShapeDtypeStruct((S, B, D), x.dtype)

    TS = _pick_seq_tile(S, B, D, jnp.dtype(x.dtype).itemsize)
    grid = (S // TS,)
    # ~2 MiB tiles * (2x x + 2x pe + 2x out) stays well under v7x's 64 MiB
    # physical VMEM; 32 MiB scoped limit is safe on every generation.
    cparams = pltpu.CompilerParams(
        dimension_semantics=("parallel",),
        vmem_limit_bytes=32 * 1024 * 1024,
    )

    if training and dropout_p > 0.0:
        if dropout_p >= 1.0:
            return jnp.zeros_like(x)
        thresh_u = min(max(int(round(dropout_p * 2.0 ** 32)), 0), 2 ** 32 - 1)
        keep_thresh = thresh_u - 2 ** 31               # signed-compare threshold
        kernel = functools.partial(
            _pe_add_dropout_kernel,
            keep_thresh=keep_thresh,
            inv_keep=float(1.0 / (1.0 - dropout_p)),
        )
        grid_spec = pltpu.PrefetchScalarGridSpec(
            num_scalar_prefetch=1,
            grid=grid,
            in_specs=[
                pl.BlockSpec((TS, B, D), lambda i, seed_ref: (i, 0, 0)),
                pl.BlockSpec((TS, 1, D), lambda i, seed_ref: (i, 0, 0)),
            ],
            out_specs=pl.BlockSpec((TS, B, D), lambda i, seed_ref: (i, 0, 0)),
        )
        return pl.pallas_call(
            kernel,
            out_shape=out_shape,
            grid_spec=grid_spec,
            compiler_params=cparams,
        )(jnp.asarray([seed], dtype=jnp.int32), x, pe_slice)

    # Eval mode (dropout is identity) — same tiled, pipelined grid.
    grid_spec = pltpu.PrefetchScalarGridSpec(
        num_scalar_prefetch=0,
        grid=grid,
        in_specs=[
            pl.BlockSpec((TS, B, D), lambda i: (i, 0, 0)),
            pl.BlockSpec((TS, 1, D), lambda i: (i, 0, 0)),
        ],
        out_specs=pl.BlockSpec((TS, B, D), lambda i: (i, 0, 0)),
    )
    return pl.pallas_call(
        _pe_add_kernel,
        out_shape=out_shape,
        grid_spec=grid_spec,
        compiler_params=cparams,
    )(x, pe_slice)


# ----------------------------------------------------------------------------
# Main
# ----------------------------------------------------------------------------
if __name__ == "__main__":
    d_model = 32
    max_len = 64
    seq_len = 8
    batch = 2
    dropout_p = 0.1

    pe = make_positional_encoding_table(d_model, max_len)

    key = jax.random.PRNGKey(0)
    x = jax.random.normal(key, (seq_len, batch, d_model), dtype=jnp.float32)

    # Training-mode forward (add + dropout).
    out_train = positional_encoding_forward(
        x, pe, dropout_p=dropout_p, training=True, seed=1234
    )
    out_train = jax.block_until_ready(out_train)

    # Eval-mode forward (add only) — cross-check against plain JAX reference.
    out_eval = positional_encoding_forward(
        x, pe, dropout_p=dropout_p, training=False
    )
    out_eval = jax.block_until_ready(out_eval)

    ref_eval = x + pe[:seq_len]
    assert out_train.shape == (seq_len, batch, d_model)
    assert out_eval.shape == (seq_len, batch, d_model)
    assert jnp.allclose(out_eval, ref_eval, atol=1e-6, rtol=1e-6)
    assert bool(jnp.all(jnp.isfinite(out_train)))

    # Dropout sanity: every surviving element equals (x+pe)/(1-p) or is zero,
    # and the drop fraction is plausible (neither all-kept nor all-dropped).
    scaled_ref = ref_eval / (1.0 - dropout_p)
    ok = jnp.logical_or(
        jnp.isclose(out_train, scaled_ref, atol=1e-5, rtol=1e-5),
        out_train == 0.0,
    )
    assert bool(jnp.all(ok))
    drop_frac = float(jnp.mean((out_train == 0.0).astype(jnp.float32)))
    assert 0.0 < drop_frac < 0.5, f"implausible drop fraction {drop_frac}"

    print("KERNEL_OK")
</pallas_src>

<mosaic_0001>
module attributes {stable_mosaic.version = 11 : i64} {
  func.func @_pe_add_dropout_kernel(%arg0: i32, %arg1: memref<1xi32, #tpu.memory_space<smem>>, %arg2: memref<8x2x32xf32, #tpu.memory_space<vmem>>, %arg3: memref<8x1x32xf32, #tpu.memory_space<vmem>>, %arg4: memref<8x2x32xf32, #tpu.memory_space<vmem>>) attributes {dimension_semantics = [#tpu.dimension_semantics<parallel>], iteration_bounds = array<i64: 1>, scalar_prefetch = 1 : i64, scratch_operands = 0 : i64, tpu.core_type = #tpu.core_type<tc>, window_params = [{transform_indices = @transform_0, window_bounds = array<i64: 8, 2, 32>}, {transform_indices = @transform_1, window_bounds = array<i64: 8, 1, 32>}, {transform_indices = @transform_2, window_bounds = array<i64: 8, 2, 32>}]} {
    %c0 = arith.constant 0 : index
    %c0_0 = arith.constant 0 : index
    %c0_1 = arith.constant 0 : index
    %0 = vector.load %arg2[%c0, %c0_0, %c0_1] : memref<8x2x32xf32, #tpu.memory_space<vmem>>, vector<8x2x32xf32>
    %c0_2 = arith.constant 0 : index
    %c0_3 = arith.constant 0 : index
    %c0_4 = arith.constant 0 : index
    %1 = vector.load %arg3[%c0_2, %c0_3, %c0_4] : memref<8x1x32xf32, #tpu.memory_space<vmem>>, vector<8x1x32xf32>
    %2 = vector.broadcast %1 : vector<8x1x32xf32> to vector<8x2x32xf32>
    %3 = arith.addf %0, %2 : vector<8x2x32xf32>
    %4 = tpu.iota {dimensions = array<i32: 0>} : vector<8x2x32xi32>
    %c8_i32 = arith.constant 8 : i32
    %5 = arith.muli %arg0, %c8_i32 : i32
    %6 = vector.broadcast %5 : i32 to vector<8x2x32xi32>
    %7 = arith.addi %4, %6 : vector<8x2x32xi32>
    %8 = tpu.iota {dimensions = array<i32: 1>} : vector<8x2x32xi32>
    %9 = tpu.iota {dimensions = array<i32: 2>} : vector<8x2x32xi32>
    %c2_i32 = arith.constant 2 : i32
    %10 = vector.broadcast %c2_i32 : i32 to vector<8x2x32xi32>
    %11 = arith.muli %7, %10 : vector<8x2x32xi32>
    %12 = arith.addi %11, %8 : vector<8x2x32xi32>
    %c32_i32 = arith.constant 32 : i32
    %13 = vector.broadcast %c32_i32 : i32 to vector<8x2x32xi32>
    %14 = arith.muli %12, %13 : vector<8x2x32xi32>
    %15 = arith.addi %14, %9 : vector<8x2x32xi32>
    %c0_5 = arith.constant 0 : index
    %16 = memref.load %arg1[%c0_5] : memref<1xi32, #tpu.memory_space<smem>>
    %c-1640531527_i32 = arith.constant -1640531527 : i32
    %17 = arith.muli %16, %c-1640531527_i32 : i32
    %18 = vector.broadcast %17 : i32 to vector<8x2x32xi32>
    %19 = arith.xori %15, %18 : vector<8x2x32xi32>
    %c16_i32 = arith.constant 16 : i32
    %20 = vector.broadcast %c16_i32 : i32 to vector<8x2x32xi32>
    %21 = arith.shrui %19, %20 : vector<8x2x32xi32>
    %22 = arith.xori %19, %21 : vector<8x2x32xi32>
    %c-2048144789_i32 = arith.constant -2048144789 : i32
    %23 = vector.broadcast %c-2048144789_i32 : i32 to vector<8x2x32xi32>
    %24 = arith.muli %22, %23 : vector<8x2x32xi32>
    %c13_i32 = arith.constant 13 : i32
    %25 = vector.broadcast %c13_i32 : i32 to vector<8x2x32xi32>
    %26 = arith.shrui %24, %25 : vector<8x2x32xi32>
    %27 = arith.xori %24, %26 : vector<8x2x32xi32>
    %c-1028477387_i32 = arith.constant -1028477387 : i32
    %28 = vector.broadcast %c-1028477387_i32 : i32 to vector<8x2x32xi32>
    %29 = arith.muli %27, %28 : vector<8x2x32xi32>
    %c16_i32_6 = arith.constant 16 : i32
    %30 = vector.broadcast %c16_i32_6 : i32 to vector<8x2x32xi32>
    %31 = arith.shrui %29, %30 : vector<8x2x32xi32>
    %32 = arith.xori %29, %31 : vector<8x2x32xi32>
    %c-1717986918_i32 = arith.constant -1717986918 : i32
    %33 = vector.broadcast %c-1717986918_i32 : i32 to vector<8x2x32xi32>
    %34 = arith.cmpi sge, %32, %33 : vector<8x2x32xi32>
    %cst = arith.constant 0.000000e+00 : f32
    %35 = vector.broadcast %cst : f32 to vector<8x2x32xf32>
    %36 = arith.select %34, %3, %35 : vector<8x2x32xi1>, vector<8x2x32xf32>
    %cst_7 = arith.constant 1.11111116 : f32
    %37 = vector.broadcast %cst_7 : f32 to vector<8x2x32xf32>
    %38 = arith.mulf %36, %37 : vector<8x2x32xf32>
    %c0_8 = arith.constant 0 : index
    %c0_9 = arith.constant 0 : index
    %c0_10 = arith.constant 0 : index
    %39 = vector.load %arg4[%c0_8, %c0_9, %c0_10] : memref<8x2x32xf32, #tpu.memory_space<vmem>>, vector<8x2x32xf32>
    tpu.vector_store %arg4[%c0_8, %c0_9, %c0_10], %38 {strides = array<i32>} : memref<8x2x32xf32, #tpu.memory_space<vmem>>, vector<8x2x32xf32>,
    return
  }
  func.func @transform_0(%arg0: i32, %arg1: memref<1xi32, #tpu.memory_space<smem>>) -> (i32, i32, i32) {
    %c0_i32 = arith.constant 0 : i32
    %c0_i32_0 = arith.constant 0 : i32
    %c0_i32_1 = arith.constant 0 : i32
    return %arg0, %c0_i32, %c0_i32_0 : i32, i32, i32
  }
  func.func @transform_1(%arg0: i32, %arg1: memref<1xi32, #tpu.memory_space<smem>>) -> (i32, i32, i32) {
    %c0_i32 = arith.constant 0 : i32
    %c0_i32_0 = arith.constant 0 : i32
    %c0_i32_1 = arith.constant 0 : i32
    return %arg0, %c0_i32, %c0_i32_0 : i32, i32, i32
  }
  func.func @transform_2(%arg0: i32, %arg1: memref<1xi32, #tpu.memory_space<smem>>) -> (i32, i32, i32) {
    %c0_i32 = arith.constant 0 : i32
    %c0_i32_0 = arith.constant 0 : i32
    %c0_i32_1 = arith.constant 0 : i32
    return %arg0, %c0_i32, %c0_i32_0 : i32, i32, i32
  }
}

</mosaic_0001>

<llo_original>
// kernel: tpu_custom_call.1
$region0: #{tpu_custom_call.1}
  #allocation0 [shape = 'u32[]', space=smem, size = 0x4, offset = 0x4, fixed_abs, tag = 'smem constant byte address 0x4 - core index']
  #allocation1 [shape = 'u32[144,128]{1,0:T(1,128)}', space=vmem, size = 0x12000, scoped, tag = 'internal scratch']
  #allocation2 [shape = 's32[1]{0}', space=sflag, size = 0x4, scoped, tag = 'scoped memory for tpu_custom_call.1']
  #allocation3 [shape = 's32[1]{0:T(128)S(6)}', space=smem, size = 0x200, scoped, tag = 'prefetched SMEM operand 0']
  %s0 = inlined_call_operand.<no memory space> [shape: s32[1], index: 0, kind: input, shape index: {}]
  %s1 = inlined_call_operand.hbm [shape: f32[8,2,32], index: 1, kind: input, shape index: {}]
  %s2 = inlined_call_operand.hbm [shape: f32[8,1,32], index: 2, kind: input, shape index: {}]
  %s3 = inlined_call_operand.hbm [shape: f32[8,2,32], index: 3, kind: output, shape index: {}]
  %s4 = sld [smem:[#allocation0]]
  $region26: #{tpu_custom_call.1} parent=0
    _
  %s6 = ssub.s32 1, %s4
  %s7 = scalar_select 0, %s6, %s4
  %8 = sst [smem:[#allocation3]] %s0
  $region1: #{tpu_custom_call.1} parent=0
    #allocation4 [shape = 'u8[8192]{0}', space=vmem, size = 0x2000, scoped, tag = 'input window, operand 1, single buffered']
    #allocation5 [shape = 's32[1]{0}', space=sflag, size = 0x4, scoped, tag = 'scoped memory for tpu_custom_call.1']
    #allocation6 [shape = 's32[1]{0}', space=sflag, size = 0x4, scoped, tag = 'scoped memory for tpu_custom_call.1']
    #allocation7 [shape = 'u8[4096]{0}', space=vmem, size = 0x1000, scoped, tag = 'input window, operand 2, single buffered']
    #allocation8 [shape = 's32[1]{0}', space=sflag, size = 0x4, scoped, tag = 'scoped memory for tpu_custom_call.1']
    #allocation9 [shape = 'u8[8192]{0}', space=vmem, size = 0x2000, scoped, tag = 'output window, operand 0, single buffered']
    %9 = vsyncpa [#allocation5], 0
    %10 = vsyncpa [#allocation8], 0
    %11 = vsyncpa [#allocation6], 0
    // Predicated region
    $region2: #{tpu_custom_call.1} parent=1 // pred_check
      _
    $region3: #{tpu_custom_call.1} parent=1 // pred_check_branch
      %13 = sbr.rel (0) target = $region5
    $region4: #{tpu_custom_call.1} parent=1 // pred_region
      %s15 = ssub.s32 256, 256
      %16 = vsyncadd [#allocation5], %s15
      %s17 = sshll.u32 [#allocation4], 4
      %s18 = int_to_ptr.vmem [resolvable:$true] %s17
      %23 = dma.hbm_to_vmem [thread:$0]  %s1, 256, %s18, [#allocation5], 32, 32, 2
    $region5: #{tpu_custom_call.1} parent=1 // pred_fallthru
      _
    // Predicated region
    $region6: #{tpu_custom_call.1} parent=1 // pred_check
      _
    $region7: #{tpu_custom_call.1} parent=1 // pred_check_branch
      %25 = sbr.rel (0) target = $region9
    $region8: #{tpu_custom_call.1} parent=1 // pred_region
      %s27 = ssub.s32 128, 128
      %28 = vsyncadd [#allocation8], %s27
      %s29 = sshll.u32 [#allocation7], 4
      %s30 = int_to_ptr.vmem [resolvable:$true] %s29
      %35 = dma.hbm_to_vmem [thread:$0]  %s2, 128, %s30, [#allocation8], 16, 16, 1
    $region9: #{tpu_custom_call.1} parent=1 // pred_fallthru
      _
    // Predicated region
    $region10: #{tpu_custom_call.1} parent=1 // pred_check
      _
    $region11: #{tpu_custom_call.1} parent=1 // pred_check_branch
      %37 = sbr.rel (0) target = $region13
    $region12: #{tpu_custom_call.1} parent=1 // pred_region
      %38 = dma.done [#allocation5], 256
    $region13: #{tpu_custom_call.1} parent=1 // pred_fallthru
      _
    // Predicated region
    $region14: #{tpu_custom_call.1} parent=1 // pred_check
      _
    $region15: #{tpu_custom_call.1} parent=1 // pred_check_branch
      %40 = sbr.rel (0) target = $region17
    $region16: #{tpu_custom_call.1} parent=1 // pred_region
      %41 = dma.done [#allocation8], 128
    $region17: #{tpu_custom_call.1} parent=1 // pred_fallthru
      _
    %v42 = vld [vmem:[#allocation4] sm:$0x3]
    %v43 = vld [vmem:[#allocation4 + $0x2] sm:$0x3]
    %v44 = vld [vmem:[#allocation4 + $0x4] sm:$0x3]
    %v45 = vld [vmem:[#allocation4 + $0x6] sm:$0x3]
    %v46 = vld [vmem:[#allocation4 + $0x8] sm:$0x3]
    %v47 = vld [vmem:[#allocation4 + $0xa] sm:$0x3]
    %v48 = vld [vmem:[#allocation4 + $0xc] sm:$0x3]
    %v49 = vld [vmem:[#allocation4 + $0xe] sm:$0x3]
    %v50 = vld [vmem:[#allocation7] sm:$0x1]
    %v51 = vld [vmem:[#allocation7 + $0x1] sm:$0x1]
    %v52 = vld [vmem:[#allocation7 + $0x2] sm:$0x1]
    %v53 = vld [vmem:[#allocation7 + $0x3] sm:$0x1]
    %v54 = vld [vmem:[#allocation7 + $0x4] sm:$0x1]
    %v55 = vld [vmem:[#allocation7 + $0x5] sm:$0x1]
    %v56 = vld [vmem:[#allocation7 + $0x6] sm:$0x1]
    %v57 = vld [vmem:[#allocation7 + $0x7] sm:$0x1]
    %v66 = vlaneseq
    %v67 = vshrl.u32 %v66, 7
    %v68 = vsub.s32 0, %v67
    %v69 = vrot.slane %v50, %v68
    %v70 = vlaneseq
    %v71 = vshrl.u32 %v70, 7
    %v72 = vsub.s32 0, %v71
    %v73 = vrot.slane %v51, %v72
    %v74 = vlaneseq
    %v75 = vshrl.u32 %v74, 7
    %v76 = vsub.s32 0, %v75
    %v77 = vrot.slane %v52, %v76
    %v78 = vlaneseq
    %v79 = vshrl.u32 %v78, 7
    %v80 = vsub.s32 0, %v79
    %v81 = vrot.slane %v53, %v80
    %v82 = vlaneseq
    %v83 = vshrl.u32 %v82, 7
    %v84 = vsub.s32 0, %v83
    %v85 = vrot.slane %v54, %v84
    %v86 = vlaneseq
    %v87 = vshrl.u32 %v86, 7
    %v88 = vsub.s32 0, %v87
    %v89 = vrot.slane %v55, %v88
    %v90 = vlaneseq
    %v91 = vshrl.u32 %v90, 7
    %v92 = vsub.s32 0, %v91
    %v93 = vrot.slane %v56, %v92
    %v94 = vlaneseq
    %v95 = vshrl.u32 %v94, 7
    %v96 = vsub.s32 0, %v95
    %v97 = vrot.slane %v57, %v96
    %v106 = vadd.f32 %v42, %v69
    %v107 = vadd.f32 %v43, %v73
    %v108 = vadd.f32 %v44, %v77
    %v109 = vadd.f32 %v45, %v81
    %v110 = vadd.f32 %v46, %v85
    %v111 = vadd.f32 %v47, %v89
    %v112 = vadd.f32 %v48, %v93
    %v113 = vadd.f32 %v49, %v97
    %s114 = smul.u32 0, 8
    %v115 = vstv %s114
    %v116 = vadd.s32 %v115, 1
    %v117 = vadd.s32 %v115, 2
    %v118 = vadd.s32 %v115, 3
    %v119 = vadd.s32 %v115, 4
    %v120 = vadd.s32 %v115, 5
    %v121 = vadd.s32 %v115, 6
    %v122 = vadd.s32 %v115, 7
    %v123 = vlaneseq
    %v124 = vshrl.u32 %v123, 7
    %v125 = vlaneseq
    %v126 = vand.u32 %v125, 127
    %v127 = vmul.u32 %v115, 2
    %v128 = vmul.u32 %v116, 2
    %v129 = vmul.u32 %v117, 2
    %v130 = vmul.u32 %v118, 2
    %v131 = vmul.u32 %v119, 2
    %v132 = vmul.u32 %v120, 2
    %v133 = vmul.u32 %v121, 2
    %v134 = vmul.u32 %v122, 2
    %v135 = vadd.s32 %v127, %v124
    %v136 = vadd.s32 %v128, %v124
    %v137 = vadd.s32 %v129, %v124
    %v138 = vadd.s32 %v130, %v124
    %v139 = vadd.s32 %v131, %v124
    %v140 = vadd.s32 %v132, %v124
    %v141 = vadd.s32 %v133, %v124
    %v142 = vadd.s32 %v134, %v124
    %v143 = vmul.u32 %v135, 32
    %v144 = vmul.u32 %v136, 32
    %v145 = vmul.u32 %v137, 32
    %v146 = vmul.u32 %v138, 32
    %v147 = vmul.u32 %v139, 32
    %v148 = vmul.u32 %v140, 32
    %v149 = vmul.u32 %v141, 32
    %v150 = vmul.u32 %v142, 32
    %v151 = vadd.s32 %v143, %v126
    %v152 = vadd.s32 %v144, %v126
    %v153 = vadd.s32 %v145, %v126
    %v154 = vadd.s32 %v146, %v126
    %v155 = vadd.s32 %v147, %v126
    %v156 = vadd.s32 %v148, %v126
    %v157 = vadd.s32 %v149, %v126
    %v158 = vadd.s32 %v150, %v126
    %s159 = sld [smem:[#allocation3]]
    %s160 = smul.u32 %s159, 2654435769
    %v161 = vstv %s160
    %v162 = vxor.u32 %v151, %v161
    %v163 = vxor.u32 %v152, %v161
    %v164 = vxor.u32 %v153, %v161
    %v165 = vxor.u32 %v154, %v161
    %v166 = vxor.u32 %v155, %v161
    %v167 = vxor.u32 %v156, %v161
    %v168 = vxor.u32 %v157, %v161
    %v169 = vxor.u32 %v158, %v161
    %v170 = vshrl.u32 %v162, 16
    %v171 = vshrl.u32 %v163, 16
    %v172 = vshrl.u32 %v164, 16
    %v173 = vshrl.u32 %v165, 16
    %v174 = vshrl.u32 %v166, 16
    %v175 = vshrl.u32 %v167, 16
    %v176 = vshrl.u32 %v168, 16
    %v177 = vshrl.u32 %v169, 16
    %v178 = vxor.u32 %v162, %v170
    %v179 = vxor.u32 %v163, %v171
    %v180 = vxor.u32 %v164, %v172
    %v181 = vxor.u32 %v165, %v173
    %v182 = vxor.u32 %v166, %v174
    %v183 = vxor.u32 %v167, %v175
    %v184 = vxor.u32 %v168, %v176
    %v185 = vxor.u32 %v169, %v177
    %v186 = vmul.u32 %v178, 2246822507
    %v187 = vmul.u32 %v179, 2246822507
    %v188 = vmul.u32 %v180, 2246822507
    %v189 = vmul.u32 %v181, 2246822507
    %v190 = vmul.u32 %v182, 2246822507
    %v191 = vmul.u32 %v183, 2246822507
    %v192 = vmul.u32 %v184, 2246822507
    %v193 = vmul.u32 %v185, 2246822507
    %v194 = vshrl.u32 %v186, 13
    %v195 = vshrl.u32 %v187, 13
    %v196 = vshrl.u32 %v188, 13
    %v197 = vshrl.u32 %v189, 13
    %v198 = vshrl.u32 %v190, 13
    %v199 = vshrl.u32 %v191, 13
    %v200 = vshrl.u32 %v192, 13
    %v201 = vshrl.u32 %v193, 13
    %v202 = vxor.u32 %v186, %v194
    %v203 = vxor.u32 %v187, %v195
    %v204 = vxor.u32 %v188, %v196
    %v205 = vxor.u32 %v189, %v197
    %v206 = vxor.u32 %v190, %v198
    %v207 = vxor.u32 %v191, %v199
    %v208 = vxor.u32 %v192, %v200
    %v209 = vxor.u32 %v193, %v201
    %v210 = vmul.u32 %v202, 3266489909
    %v211 = vmul.u32 %v203, 3266489909
    %v212 = vmul.u32 %v204, 3266489909
    %v213 = vmul.u32 %v205, 3266489909
    %v214 = vmul.u32 %v206, 3266489909
    %v215 = vmul.u32 %v207, 3266489909
    %v216 = vmul.u32 %v208, 3266489909
    %v217 = vmul.u32 %v209, 3266489909
    %v218 = vshrl.u32 %v210, 16
    %v219 = vshrl.u32 %v211, 16
    %v220 = vshrl.u32 %v212, 16
    %v221 = vshrl.u32 %v213, 16
    %v222 = vshrl.u32 %v214, 16
    %v223 = vshrl.u32 %v215, 16
    %v224 = vshrl.u32 %v216, 16
    %v225 = vshrl.u32 %v217, 16
    %v226 = vxor.u32 %v210, %v218
    %v227 = vxor.u32 %v211, %v219
    %v228 = vxor.u32 %v212, %v220
    %v229 = vxor.u32 %v213, %v221
    %v230 = vxor.u32 %v214, %v222
    %v231 = vxor.u32 %v215, %v223
    %v232 = vxor.u32 %v216, %v224
    %v233 = vxor.u32 %v217, %v225
    %vm234 = vcmp.ge.s32.totalorder %v226, 2576980378
    %vm235 = vcmp.ge.s32.totalorder %v227, 2576980378
    %vm236 = vcmp.ge.s32.totalorder %v228, 2576980378
    %vm237 = vcmp.ge.s32.totalorder %v229, 2576980378
    %vm238 = vcmp.ge.s32.totalorder %v230, 2576980378
    %vm239 = vcmp.ge.s32.totalorder %v231, 2576980378
    %vm240 = vcmp.ge.s32.totalorder %v232, 2576980378
    %vm241 = vcmp.ge.s32.totalorder %v233, 2576980378
    %v242 = vsel %vm234, %v106, 0.0
    %v243 = vsel %vm235, %v107, 0.0
    %v244 = vsel %vm236, %v108, 0.0
    %v245 = vsel %vm237, %v109, 0.0
    %v246 = vsel %vm238, %v110, 0.0
    %v247 = vsel %vm239, %v111, 0.0
    %v248 = vsel %vm240, %v112, 0.0
    %v249 = vsel %vm241, %v113, 0.0
    %v250 = vmul.f32 %v242, 1.1111112
    %v251 = vmul.f32 %v243, 1.1111112
    %v252 = vmul.f32 %v244, 1.1111112
    %v253 = vmul.f32 %v245, 1.1111112
    %v254 = vmul.f32 %v246, 1.1111112
    %v255 = vmul.f32 %v247, 1.1111112
    %v256 = vmul.f32 %v248, 1.1111112
    %v257 = vmul.f32 %v249, 1.1111112
    %vm258 = vcmask 254976
    %259 = vst.msk [vmem:[#allocation9] sm:$0x3] %vm258, %v250
    %260 = vst.msk [vmem:[#allocation9 + $0x2] sm:$0x3] %vm258, %v251
    %261 = vst.msk [vmem:[#allocation9 + $0x4] sm:$0x3] %vm258, %v252
    %262 = vst.msk [vmem:[#allocation9 + $0x6] sm:$0x3] %vm258, %v253
    %263 = vst.msk [vmem:[#allocation9 + $0x8] sm:$0x3] %vm258, %v254
    %264 = vst.msk [vmem:[#allocation9 + $0xa] sm:$0x3] %vm258, %v255
    %265 = vst.msk [vmem:[#allocation9 + $0xc] sm:$0x3] %vm258, %v256
    %266 = vst.msk [vmem:[#allocation9 + $0xe] sm:$0x3] %vm258, %v257
    // Predicated region
    $region18: #{tpu_custom_call.1} parent=1 // pred_check
      _
    $region19: #{tpu_custom_call.1} parent=1 // pred_check_branch
      %268 = sbr.rel (0) target = $region21
    $region20: #{tpu_custom_call.1} parent=1 // pred_region
      %s270 = ssub.s32 256, 256
      %271 = vsyncadd [#allocation6], %s270
      %s272 = sshll.u32 [#allocation9], 4
      %s273 = int_to_ptr.vmem [resolvable:$true] %s272
      %278 = dma.vmem_to_hbm [thread:$0]  %s273, 256, %s3, [#allocation6], 32, 32, 2
    $region21: #{tpu_custom_call.1} parent=1 // pred_fallthru
      _
    // Predicated region
    $region22: #{tpu_custom_call.1} parent=1 // pred_check
      _
    $region23: #{tpu_custom_call.1} parent=1 // pred_check_branch
      %280 = sbr.rel (0) target = $region25
    $region24: #{tpu_custom_call.1} parent=1 // pred_region
      %281 = dma.done [#allocation6], 256
    $region25: #{tpu_custom_call.1} parent=1 // pred_fallthru
      _
    %282 = vsyncpa [#allocation5], 1
    %283 = vsyncpa [#allocation8], 1
    %284 = vsyncpa [#allocation6], 1

</llo_original>
